<compile_context>
chip_gen: v7x
topology: tpu7x:2x2x1
jax: 0.10.0
libtpu: 0.0.40
codegen_flags: <defaults>
</compile_context>

<pallas_src>
import jax
import jax.numpy as jnp
from jax.experimental import pallas as pl
from jax.experimental.pallas import tpu as pltpu

LANE = 128


def _round_up(x, m):
    return ((x + m - 1) // m) * m


def _pad2(a, rows, cols):
    return jnp.pad(a, ((0, rows - a.shape[0]), (0, cols - a.shape[1])))


def dqn_kernel(x_ref, w1_ref, b1_ref, w2_ref, b2_ref, w3_ref, b3_ref, o_ref):
    # Layer 1: Linear + ReLU (MXU matmul, f32 accumulation). x is unpadded
    # [tile, D]; W1 is [D, F1p], so h1 is lane-dense.
    h1 = jnp.dot(x_ref[...], w1_ref[...], preferred_element_type=jnp.float32)
    h1 = jnp.maximum(h1 + b1_ref[...], 0.0)
    # Layer 2: Linear + ReLU (lane-dense intermediates).
    h2 = jnp.dot(h1, w2_ref[...], preferred_element_type=jnp.float32)
    h2 = jnp.maximum(h2 + b2_ref[...], 0.0)
    # Layer 3: Linear (Q-values, no activation). Output is unpadded [tile, A];
    # the single masked store is far cheaper than a 16x-padded HBM write.
    q = jnp.dot(h2, w3_ref[...], preferred_element_type=jnp.float32)
    o_ref[...] = (q + b3_ref[...]).astype(o_ref.dtype)


def prepare_params(params):
    """Pad weights/biases ONCE (cache the result; re-run after optimizer steps).

    Only the hidden dims (fc1, fc2) are padded to multiples of 128 so the
    in-kernel intermediates are lane-dense.  The input dim D and the output
    dim n_actions are left unpadded.  Padding is with exact zeros, so the
    forward result is bit-identical to the unpadded computation.
    """
    w1, b1, w2, b2, w3, b3 = params
    D, fc1 = w1.shape
    fc2 = w2.shape[1]
    n_actions = w3.shape[1]
    F1p = _round_up(fc1, LANE)
    F2p = _round_up(fc2, LANE)

    w1p = _pad2(w1.astype(jnp.float32), D, F1p)
    b1p = _pad2(jnp.asarray(b1, jnp.float32).reshape(1, -1), 1, F1p)
    w2p = _pad2(w2.astype(jnp.float32), F1p, F2p)
    b2p = _pad2(jnp.asarray(b2, jnp.float32).reshape(1, -1), 1, F2p)
    w3p = _pad2(w3.astype(jnp.float32), F2p, n_actions)
    b3p = jnp.asarray(b3, jnp.float32).reshape(1, -1)
    return (w1p, b1p, w2p, b2p, w3p, b3p)


def _auto_batch_tile(B):
    # Single-TensorCore chips (v5e/v6e): one un-gridded block avoids the
    # ~0.35 us/step grid overhead; everything fits VMEM trivially.
    if B <= 512:
        return B
    # Large batches: >=2 "parallel" blocks (v7x has 2 TCs), tiles up to 1024
    # rows for good HBM streaming efficiency. VMEM stays well under limits.
    return min(1024, _round_up(pl.cdiv(B, 2), 128))


def dqn_forward(state, padded_params, *, batch_tile=None):
    """Fused 3-layer DQN MLP forward. `padded_params` from prepare_params()."""
    w1p, b1p, w2p, b2p, w3p, b3p = padded_params
    B, D = state.shape
    assert D == w1p.shape[0], "state feature dim mismatch"
    F1p = w1p.shape[1]
    F2p = w2p.shape[1]
    n_actions = w3p.shape[1]

    x = state.astype(jnp.float32)

    if batch_tile is None:
        batch_tile = _auto_batch_tile(B)
    batch_tile = min(batch_tile, B)
    num_blocks = pl.cdiv(B, batch_tile)

    out_shape = jax.ShapeDtypeStruct((B, n_actions), jnp.float32)

    if num_blocks == 1:
        # Single block: skip the pipelined grid entirely; all operands are
        # whole-array VMEM-resident for one kernel invocation.
        return pl.pallas_call(
            dqn_kernel,
            out_shape=out_shape,
        )(x, w1p, b1p, w2p, b2p, w3p, b3p)

    return pl.pallas_call(
        dqn_kernel,
        out_shape=out_shape,
        grid=(num_blocks,),
        in_specs=[
            # Unpadded state tile: last dim == full array dim (legal), so only
            # useful bytes stream from HBM.
            pl.BlockSpec((batch_tile, D), lambda i: (i, 0)),
            # Constant index_map => weights/biases stay VMEM-resident and are
            # not re-DMA'd per grid step.
            pl.BlockSpec((D, F1p), lambda i: (0, 0)),          # W1
            pl.BlockSpec((1, F1p), lambda i: (0, 0)),           # b1
            pl.BlockSpec((F1p, F2p), lambda i: (0, 0)),         # W2
            pl.BlockSpec((1, F2p), lambda i: (0, 0)),            # b2
            pl.BlockSpec((F2p, n_actions), lambda i: (0, 0)),    # W3
            pl.BlockSpec((1, n_actions), lambda i: (0, 0)),      # b3
        ],
        # Unpadded output block: last dim == full array dim.
        out_specs=pl.BlockSpec((batch_tile, n_actions), lambda i: (i, 0)),
        compiler_params=pltpu.CompilerParams(
            dimension_semantics=("parallel",)
        ),
    )(x, w1p, b1p, w2p, b2p, w3p, b3p)


def init_linear(key, fan_in, fan_out):
    """PyTorch-style nn.Linear init: U(-1/sqrt(fan_in), 1/sqrt(fan_in))."""
    kw, kb = jax.random.split(key)
    bound = 1.0 / jnp.sqrt(fan_in)
    w = jax.random.uniform(kw, (fan_in, fan_out), jnp.float32, -bound, bound)
    b = jax.random.uniform(kb, (1, fan_out), jnp.float32, -bound, bound)
    return w, b


def reference_forward(state, params):
    w1, b1, w2, b2, w3, b3 = params
    h1 = jnp.maximum(state @ w1 + b1, 0.0)
    h2 = jnp.maximum(h1 @ w2 + b2, 0.0)
    return h2 @ w3 + b3


if __name__ == "__main__":
    # Small shapes consistent with DQNConfigs(input_dims=(16,), fc1=32, fc2=32, n_actions=8)
    B = 16
    INPUT_DIMS = 16
    FC1 = 32
    FC2 = 32
    N_ACTIONS = 8

    key = jax.random.PRNGKey(0)
    k_state, k_state2, k1, k2, k3 = jax.random.split(key, 5)

    state = jax.random.normal(k_state, (B, INPUT_DIMS), jnp.float32)
    w1, b1 = init_linear(k1, INPUT_DIMS, FC1)
    w2, b2 = init_linear(k2, FC1, FC2)
    w3, b3 = init_linear(k3, FC2, N_ACTIONS)
    params = (w1, b1, w2, b2, w3, b3)
    padded_params = prepare_params(params)   # pad once, reuse every forward

    # 1) Default path: single un-gridded invocation (B <= 512).
    q_single = dqn_forward(state, padded_params)
    # 2) Gridded path, batch divisible by the tile (2 blocks of 8).
    q_tiled = dqn_forward(state, padded_params, batch_tile=8)
    # 3) Gridded path with a ragged last block (B=20, tile=8 -> 8, 8, 4).
    B2 = 20
    state2 = jax.random.normal(k_state2, (B2, INPUT_DIMS), jnp.float32)
    q_ragged = dqn_forward(state2, padded_params, batch_tile=8)

    q_single, q_tiled, q_ragged = jax.block_until_ready(
        (q_single, q_tiled, q_ragged))

    q_ref = reference_forward(state, params)
    q_ref2 = reference_forward(state2, params)

    assert q_single.shape == (B, N_ACTIONS)
    assert q_tiled.shape == (B, N_ACTIONS)
    assert q_ragged.shape == (B2, N_ACTIONS)
    assert jnp.allclose(q_single, q_ref, atol=1e-5, rtol=1e-5), "single-block mismatch"
    assert jnp.allclose(q_tiled, q_ref, atol=1e-5, rtol=1e-5), "tiled mismatch"
    assert jnp.allclose(q_ragged, q_ref2, atol=1e-5, rtol=1e-5), "ragged-batch mismatch"

    print("KERNEL_OK")
</pallas_src>

<mosaic_0001>
module attributes {stable_mosaic.version = 11 : i64} {
  func.func @dqn_kernel(%arg0: memref<16x16xf32, #tpu.memory_space<vmem>>, %arg1: memref<16x128xf32, #tpu.memory_space<vmem>>, %arg2: memref<1x128xf32, #tpu.memory_space<vmem>>, %arg3: memref<128x128xf32, #tpu.memory_space<vmem>>, %arg4: memref<1x128xf32, #tpu.memory_space<vmem>>, %arg5: memref<128x8xf32, #tpu.memory_space<vmem>>, %arg6: memref<1x8xf32, #tpu.memory_space<vmem>>, %arg7: memref<16x8xf32, #tpu.memory_space<vmem>>) attributes {dimension_semantics = [], scalar_prefetch = 0 : i64, scratch_operands = 0 : i64, tpu.core_type = #tpu.core_type<tc>} {
    %c0 = arith.constant 0 : index
    %c0_0 = arith.constant 0 : index
    %0 = vector.load %arg0[%c0, %c0_0] : memref<16x16xf32, #tpu.memory_space<vmem>>, vector<16x16xf32>
    %c0_1 = arith.constant 0 : index
    %c0_2 = arith.constant 0 : index
    %1 = vector.load %arg1[%c0_1, %c0_2] : memref<16x128xf32, #tpu.memory_space<vmem>>, vector<16x128xf32>
    %cst = arith.constant dense<0.000000e+00> : vector<16x128xf32>
    %2 = tpu.matmul %0, %1, %cst {dimension_numbers = #tpu.dot_dimension_numbers<[1], [0], [0], [1], [0, 0, 1, 1], [], []>} : vector<16x16xf32>, vector<16x128xf32>, vector<16x128xf32> -> vector<16x128xf32>
    %c0_3 = arith.constant 0 : index
    %c0_4 = arith.constant 0 : index
    %3 = vector.load %arg2[%c0_3, %c0_4] : memref<1x128xf32, #tpu.memory_space<vmem>>, vector<1x128xf32>
    %4 = vector.broadcast %3 : vector<1x128xf32> to vector<16x128xf32>
    %5 = arith.addf %2, %4 : vector<16x128xf32>
    %cst_5 = arith.constant 0.000000e+00 : f32
    %6 = vector.broadcast %cst_5 : f32 to vector<16x128xf32>
    %7 = arith.maximumf %5, %6 : vector<16x128xf32>
    %c0_6 = arith.constant 0 : index
    %c0_7 = arith.constant 0 : index
    %8 = vector.load %arg3[%c0_6, %c0_7] : memref<128x128xf32, #tpu.memory_space<vmem>>, vector<128x128xf32>
    %cst_8 = arith.constant dense<0.000000e+00> : vector<16x128xf32>
    %9 = tpu.matmul %7, %8, %cst_8 {dimension_numbers = #tpu.dot_dimension_numbers<[1], [0], [0], [1], [0, 0, 1, 1], [], []>} : vector<16x128xf32>, vector<128x128xf32>, vector<16x128xf32> -> vector<16x128xf32>
    %c0_9 = arith.constant 0 : index
    %c0_10 = arith.constant 0 : index
    %10 = vector.load %arg4[%c0_9, %c0_10] : memref<1x128xf32, #tpu.memory_space<vmem>>, vector<1x128xf32>
    %11 = vector.broadcast %10 : vector<1x128xf32> to vector<16x128xf32>
    %12 = arith.addf %9, %11 : vector<16x128xf32>
    %cst_11 = arith.constant 0.000000e+00 : f32
    %13 = vector.broadcast %cst_11 : f32 to vector<16x128xf32>
    %14 = arith.maximumf %12, %13 : vector<16x128xf32>
    %c0_12 = arith.constant 0 : index
    %c0_13 = arith.constant 0 : index
    %15 = vector.load %arg5[%c0_12, %c0_13] : memref<128x8xf32, #tpu.memory_space<vmem>>, vector<128x8xf32>
    %cst_14 = arith.constant dense<0.000000e+00> : vector<16x8xf32>
    %16 = tpu.matmul %14, %15, %cst_14 {dimension_numbers = #tpu.dot_dimension_numbers<[1], [0], [0], [1], [0, 0, 1, 1], [], []>} : vector<16x128xf32>, vector<128x8xf32>, vector<16x8xf32> -> vector<16x8xf32>
    %c0_15 = arith.constant 0 : index
    %c0_16 = arith.constant 0 : index
    %17 = vector.load %arg6[%c0_15, %c0_16] : memref<1x8xf32, #tpu.memory_space<vmem>>, vector<1x8xf32>
    %18 = vector.broadcast %17 : vector<1x8xf32> to vector<16x8xf32>
    %19 = arith.addf %16, %18 : vector<16x8xf32>
    %c0_17 = arith.constant 0 : index
    %c0_18 = arith.constant 0 : index
    %20 = vector.load %arg7[%c0_17, %c0_18] : memref<16x8xf32, #tpu.memory_space<vmem>>, vector<16x8xf32>
    tpu.vector_store %arg7[%c0_17, %c0_18], %19 {strides = array<i32>} : memref<16x8xf32, #tpu.memory_space<vmem>>, vector<16x8xf32>,
    return
  }
}

</mosaic_0001>

<llo_original>
// kernel: tpu_custom_call.1
$region0: #{tpu_custom_call.1}
  #allocation0 [shape = 'u32[]', space=smem, size = 0x4, offset = 0x4, fixed_abs, tag = 'smem constant byte address 0x4 - core index']
  #allocation1 [shape = 'u32[144,128]{1,0:T(1,128)}', space=vmem, size = 0x12000, scoped, tag = 'internal scratch']
  %s0 = inlined_call_operand.vmem [shape: f32[16,16], index: 0, kind: input, shape index: {}]
  %s1 = inlined_call_operand.hbm [shape: f32[16,128], index: 1, kind: input, shape index: {}]
  %s2 = inlined_call_operand.vmem [shape: f32[1,128], index: 2, kind: input, shape index: {}]
  %s3 = inlined_call_operand.vmem [shape: f32[128,128], index: 3, kind: input, shape index: {}]
  %s4 = inlined_call_operand.vmem [shape: f32[1,128], index: 4, kind: input, shape index: {}]
  %s5 = inlined_call_operand.vmem [shape: f32[128,8], index: 5, kind: input, shape index: {}]
  %s6 = inlined_call_operand.vmem [shape: f32[1,8], index: 6, kind: input, shape index: {}]
  %s7 = inlined_call_operand.vmem [shape: f32[16,8], index: 7, kind: output, shape index: {}]
  %s8 = sld [smem:[#allocation0]]
  $region42: #{tpu_custom_call.1} parent=0
    _
  %s10 = ssub.s32 1, %s8
  %s11 = scalar_select 0, %s10, %s8
  $region1: #{tpu_custom_call.1} parent=0
    #allocation2 [shape = 'u8[8192]{0}', space=vmem, size = 0x2000, scoped, tag = 'input window, operand 1, single buffered']
    #allocation3 [shape = 's32[1]{0}', space=sflag, size = 0x4, scoped, tag = 'scoped memory for tpu_custom_call.1']
    %12 = vsyncpa [#allocation3], 0
    // Predicated region
    $region2: #{tpu_custom_call.1} parent=1 // pred_check
      _
    $region3: #{tpu_custom_call.1} parent=1 // pred_check_branch
      %14 = sbr.rel (0) target = $region5
    $region4: #{tpu_custom_call.1} parent=1 // pred_region
      _
    $region5: #{tpu_custom_call.1} parent=1 // pred_fallthru
      _
    // Predicated region
    $region6: #{tpu_custom_call.1} parent=1 // pred_check
      _
    $region7: #{tpu_custom_call.1} parent=1 // pred_check_branch
      %16 = sbr.rel (0) target = $region9
    $region8: #{tpu_custom_call.1} parent=1 // pred_region
      %s18 = ssub.s32 256, 256
      %19 = vsyncadd [#allocation3], %s18
      %s20 = sshll.u32 [#allocation2], 4
      %s21 = int_to_ptr.vmem [resolvable:$true] %s20
      %26 = dma.hbm_to_vmem [thread:$0]  %s1, 256, %s21, [#allocation3], 128, 128, 8
    $region9: #{tpu_custom_call.1} parent=1 // pred_fallthru
      _
    // Predicated region
    $region10: #{tpu_custom_call.1} parent=1 // pred_check
      _
    $region11: #{tpu_custom_call.1} parent=1 // pred_check_branch
      %28 = sbr.rel (0) target = $region13
    $region12: #{tpu_custom_call.1} parent=1 // pred_region
      _
    $region13: #{tpu_custom_call.1} parent=1 // pred_fallthru
      _
    // Predicated region
    $region14: #{tpu_custom_call.1} parent=1 // pred_check
      _
    $region15: #{tpu_custom_call.1} parent=1 // pred_check_branch
      %30 = sbr.rel (0) target = $region17
    $region16: #{tpu_custom_call.1} parent=1 // pred_region
      _
    $region17: #{tpu_custom_call.1} parent=1 // pred_fallthru
      _
    // Predicated region
    $region18: #{tpu_custom_call.1} parent=1 // pred_check
      _
    $region19: #{tpu_custom_call.1} parent=1 // pred_check_branch
      %32 = sbr.rel (0) target = $region21
    $region20: #{tpu_custom_call.1} parent=1 // pred_region
      _
    $region21: #{tpu_custom_call.1} parent=1 // pred_fallthru
      _
    // Predicated region
    $region22: #{tpu_custom_call.1} parent=1 // pred_check
      _
    $region23: #{tpu_custom_call.1} parent=1 // pred_check_branch
      %34 = sbr.rel (0) target = $region25
    $region24: #{tpu_custom_call.1} parent=1 // pred_region
      _
    $region25: #{tpu_custom_call.1} parent=1 // pred_fallthru
      _
    // Predicated region
    $region26: #{tpu_custom_call.1} parent=1 // pred_check
      _
    $region27: #{tpu_custom_call.1} parent=1 // pred_check_branch
      %36 = sbr.rel (0) target = $region29
    $region28: #{tpu_custom_call.1} parent=1 // pred_region
      _
    $region29: #{tpu_custom_call.1} parent=1 // pred_fallthru
      _
    // Predicated region
    $region30: #{tpu_custom_call.1} parent=1 // pred_check
      _
    $region31: #{tpu_custom_call.1} parent=1 // pred_check_branch
      %38 = sbr.rel (0) target = $region33
    $region32: #{tpu_custom_call.1} parent=1 // pred_region
      %39 = dma.done [#allocation3], 256
    $region33: #{tpu_custom_call.1} parent=1 // pred_fallthru
      _
    %v40 = vld [vmem:[%s0] sm:$0xff]
    %v41 = vld [vmem:[%s0 + $0x8] sm:$0xff]
    %v42 = vld [vmem:[#allocation2] sm:$0xff]
    %v43 = vld [vmem:[#allocation2 + $0x8] sm:$0xff]
    %v44 = vld [vmem:[%s2] sm:$0x1]
    %v46 = vlaneseq
    %v47 = vshrl.u32 %v46, 7
    %v48 = vsub.s32 0, %v47
    %v49 = vrot.slane %v44, %v48
    %vm51 = vcmask 130048
    %v53 = vsel %vm51, %v40, 0
    %v56 = vsel %vm51, %v41, 0
    %58 = vmatprep.subr.mxu0 0.0
    %59 = vmatpush1.msra.mxu0 %v42
    %60 = vmatprep.subr.mxu0 0.0
    %61 = vmatpush1.msra.mxu0 %v43
    %62 = vmatprep.subr.mxu0 0.0
    %63 = vmatpush1.msra.mxu0 0.0
    %64 = vmatprep.subr.mxu0 0.0
    %65 = vmatpush1.msra.mxu0 0.0
    %66 = vmatprep.subr.mxu0 0.0
    %67 = vmatpush1.msra.mxu0 0.0
    %68 = vmatprep.subr.mxu0 0.0
    %69 = vmatpush1.msra.mxu0 0.0
    %70 = vmatprep.subr.mxu0 0.0
    %71 = vmatpush1.msra.mxu0 0.0
    %72 = vmatprep.subr.mxu0 0.0
    %73 = vmatpush1.msra.mxu0 0.0
    %74 = vmatprep.subr.mxu0 0.0
    %75 = vmatpush1.msra.mxu0 0.0
    %76 = vmatprep.subr.mxu0 0.0
    %77 = vmatpush1.msra.mxu0 0.0
    %78 = vmatprep.subr.mxu0 0.0
    %79 = vmatpush1.msra.mxu0 0.0
    %80 = vmatprep.subr.mxu0 0.0
    %81 = vmatpush1.msra.mxu0 0.0
    %82 = vmatprep.subr.mxu0 0.0
    %83 = vmatpush1.msra.mxu0 0.0
    %84 = vmatprep.subr.mxu0 0.0
    %85 = vmatpush1.msra.mxu0 0.0
    %86 = vmatprep.subr.mxu0 0.0
    %87 = vmatpush1.msra.mxu0 0.0
    %88 = vmatprep.subr.mxu0 0.0
    %89 = vmatpush1.msra.mxu0 0.0
    %90 = vmatprep.subr.mxu0 0.0
    %91 = vmatpush1.msra.mxu0 0.0
    %92 = vmatprep.subr.mxu0 0.0
    %93 = vmatpush1.msra.mxu0 0.0
    %94 = vmatprep.subr.mxu0 0.0
    %95 = vmatpush1.msra.mxu0 0.0
    %96 = vmatprep.subr.mxu0 0.0
    %97 = vmatpush1.msra.mxu0 0.0
    %98 = vmatprep.subr.mxu0 0.0
    %99 = vmatpush1.msra.mxu0 0.0
    %100 = vmatprep.subr.mxu0 0.0
    %101 = vmatpush1.msra.mxu0 0.0
    %102 = vmatprep.subr.mxu0 0.0
    %103 = vmatpush1.msra.mxu0 0.0
    %104 = vmatprep.subr.mxu0 0.0
    %105 = vmatpush1.msra.mxu0 0.0
    %106 = vmatprep.subr.mxu0 0.0
    %107 = vmatpush1.msra.mxu0 0.0
    %108 = vmatprep.subr.mxu0 0.0
    %109 = vmatpush1.msra.mxu0 0.0
    %110 = vmatprep.subr.mxu0 0.0
    %111 = vmatpush1.msra.mxu0 0.0
    %112 = vmatprep.subr.mxu0 0.0
    %113 = vmatpush1.msra.mxu0 0.0
    %114 = vmatprep.subr.mxu0 0.0
    %115 = vmatpush1.msra.mxu0 0.0
    %116 = vmatprep.subr.mxu0 0.0
    %117 = vmatpush1.msra.mxu0 0.0
    %118 = vmatprep.subr.mxu0 0.0
    %119 = vmatpush1.msra.mxu0 0.0
    %120 = vmatprep.subr.mxu0 0.0
    %121 = vmatpush1.msra.mxu0 0.0
    %122 = vmatprep.mubr.f32.mxu0 0.0
    %123 = vmatmul.mubr.f32.gmra.mrb[0].mxu0 %v53
    %v124 = vpop.f32.mrb[0].mxu0
    %v125 = vadd.f32 %v49, %v124
    %v126 = vpop.f32.mrb[0].mxu0
    %127 = vmatprep.mubr.f32.mxu0 0.0
    %128 = vmatmul.mubr.f32.gmra.mrb[0].mxu0 %v56
    %v129 = vpop.f32.mrb[0].mxu0
    %v130 = vadd.f32 %v49, %v129
    %v131 = vpop.f32.mrb[0].mxu0
    %132 = vdwg.mxu0
    %v133 = vmax.f32 %v125, 0.0
    %v134 = vmax.f32 %v130, 0.0
    %v135 = vld [vmem:[%s3] sm:$0xff]
    %v136 = vld [vmem:[%s3 + $0x8] sm:$0xff]
    %v137 = vld [vmem:[%s3 + $0x10] sm:$0xff]
    %v138 = vld [vmem:[%s3 + $0x18] sm:$0xff]
    %v139 = vld [vmem:[%s3 + $0x20] sm:$0xff]
    %v140 = vld [vmem:[%s3 + $0x28] sm:$0xff]
    %v141 = vld [vmem:[%s3 + $0x30] sm:$0xff]
    %v142 = vld [vmem:[%s3 + $0x38] sm:$0xff]
    %v143 = vld [vmem:[%s3 + $0x40] sm:$0xff]
    %v144 = vld [vmem:[%s3 + $0x48] sm:$0xff]
    %v145 = vld [vmem:[%s3 + $0x50] sm:$0xff]
    %v146 = vld [vmem:[%s3 + $0x58] sm:$0xff]
    %v147 = vld [vmem:[%s3 + $0x60] sm:$0xff]
    %v148 = vld [vmem:[%s3 + $0x68] sm:$0xff]
    %v149 = vld [vmem:[%s3 + $0x70] sm:$0xff]
    %v150 = vld [vmem:[%s3 + $0x78] sm:$0xff]
    %v151 = vld [vmem:[%s4] sm:$0x1]
    %v153 = vlaneseq
    %v154 = vshrl.u32 %v153, 7
    %v155 = vsub.s32 0, %v154
    %v156 = vrot.slane %v151, %v155
    %158 = vmatprep.subr.mxu0 0.0
    %159 = vmatpush1.msra.mxu0 %v135
    %160 = vmatprep.subr.mxu0 0.0
    %161 = vmatpush1.msra.mxu0 %v136
    %162 = vmatprep.subr.mxu0 0.0
    %163 = vmatpush1.msra.mxu0 %v137
    %164 = vmatprep.subr.mxu0 0.0
    %165 = vmatpush1.msra.mxu0 %v138
    %166 = vmatprep.subr.mxu0 0.0
    %167 = vmatpush1.msra.mxu0 %v139
    %168 = vmatprep.subr.mxu0 0.0
    %169 = vmatpush1.msra.mxu0 %v140
    %170 = vmatprep.subr.mxu0 0.0
    %171 = vmatpush1.msra.mxu0 %v141
    %172 = vmatprep.subr.mxu0 0.0
    %173 = vmatpush1.msra.mxu0 %v142
    %174 = vmatprep.subr.mxu0 0.0
    %175 = vmatpush1.msra.mxu0 %v143
    %176 = vmatprep.subr.mxu0 0.0
    %177 = vmatpush1.msra.mxu0 %v144
    %178 = vmatprep.subr.mxu0 0.0
    %179 = vmatpush1.msra.mxu0 %v145
    %180 = vmatprep.subr.mxu0 0.0
    %181 = vmatpush1.msra.mxu0 %v146
    %182 = vmatprep.subr.mxu0 0.0
    %183 = vmatpush1.msra.mxu0 %v147
    %184 = vmatprep.subr.mxu0 0.0
    %185 = vmatpush1.msra.mxu0 %v148
    %186 = vmatprep.subr.mxu0 0.0
    %187 = vmatpush1.msra.mxu0 %v149
    %188 = vmatprep.subr.mxu0 0.0
    %189 = vmatpush1.msra.mxu0 %v150
    %190 = vmatprep.subr.mxu0 0.0
    %191 = vmatpush1.msra.mxu0 0.0
    %192 = vmatprep.subr.mxu0 0.0
    %193 = vmatpush1.msra.mxu0 0.0
    %194 = vmatprep.subr.mxu0 0.0
    %195 = vmatpush1.msra.mxu0 0.0
    %196 = vmatprep.subr.mxu0 0.0
    %197 = vmatpush1.msra.mxu0 0.0
    %198 = vmatprep.subr.mxu0 0.0
    %199 = vmatpush1.msra.mxu0 0.0
    %200 = vmatprep.subr.mxu0 0.0
    %201 = vmatpush1.msra.mxu0 0.0
    %202 = vmatprep.subr.mxu0 0.0
    %203 = vmatpush1.msra.mxu0 0.0
    %204 = vmatprep.subr.mxu0 0.0
    %205 = vmatpush1.msra.mxu0 0.0
    %206 = vmatprep.subr.mxu0 0.0
    %207 = vmatpush1.msra.mxu0 0.0
    %208 = vmatprep.subr.mxu0 0.0
    %209 = vmatpush1.msra.mxu0 0.0
    %210 = vmatprep.subr.mxu0 0.0
    %211 = vmatpush1.msra.mxu0 0.0
    %212 = vmatprep.subr.mxu0 0.0
    %213 = vmatpush1.msra.mxu0 0.0
    %214 = vmatprep.subr.mxu0 0.0
    %215 = vmatpush1.msra.mxu0 0.0
    %216 = vmatprep.subr.mxu0 0.0
    %217 = vmatpush1.msra.mxu0 0.0
    %218 = vmatprep.subr.mxu0 0.0
    %219 = vmatpush1.msra.mxu0 0.0
    %220 = vmatprep.subr.mxu0 0.0
    %221 = vmatpush1.msra.mxu0 0.0
    %222 = vmatprep.mubr.f32.mxu0 0.0
    %223 = vmatmul.mubr.f32.gmra.mrb[0].mxu0 %v133
    %v224 = vpop.f32.mrb[0].mxu0
    %v225 = vadd.f32 %v156, %v224
    %v226 = vpop.f32.mrb[0].mxu0
    %227 = vmatprep.mubr.f32.mxu0 0.0
    %228 = vmatmul.mubr.f32.gmra.mrb[0].mxu0 %v134
    %v229 = vpop.f32.mrb[0].mxu0
    %v230 = vadd.f32 %v156, %v229
    %v231 = vpop.f32.mrb[0].mxu0
    %232 = vdwg.mxu0
    %v233 = vmax.f32 %v225, 0.0
    %v234 = vmax.f32 %v230, 0.0
    %v235 = vld [vmem:[%s5] sm:$0xff]
    %v236 = vld [vmem:[%s5 + $0x8] sm:$0xff]
    %v237 = vld [vmem:[%s5 + $0x10] sm:$0xff]
    %v238 = vld [vmem:[%s5 + $0x18] sm:$0xff]
    %v239 = vld [vmem:[%s5 + $0x20] sm:$0xff]
    %v240 = vld [vmem:[%s5 + $0x28] sm:$0xff]
    %v241 = vld [vmem:[%s5 + $0x30] sm:$0xff]
    %v242 = vld [vmem:[%s5 + $0x38] sm:$0xff]
    %v243 = vld [vmem:[%s5 + $0x40] sm:$0xff]
    %v244 = vld [vmem:[%s5 + $0x48] sm:$0xff]
    %v245 = vld [vmem:[%s5 + $0x50] sm:$0xff]
    %v246 = vld [vmem:[%s5 + $0x58] sm:$0xff]
    %v247 = vld [vmem:[%s5 + $0x60] sm:$0xff]
    %v248 = vld [vmem:[%s5 + $0x68] sm:$0xff]
    %v249 = vld [vmem:[%s5 + $0x70] sm:$0xff]
    %v250 = vld [vmem:[%s5 + $0x78] sm:$0xff]
    %v251 = vld [vmem:[%s6] sm:$0x1]
    %v253 = vlaneseq
    %v254 = vshrl.u32 %v253, 7
    %v255 = vsub.s32 0, %v254
    %v256 = vrot.slane %v251, %v255
    %258 = vmatprep.subr.mxu0 0.0
    %259 = vmatpush1.msra.mxu0 %v235
    %260 = vmatprep.subr.mxu0 0.0
    %261 = vmatpush1.msra.mxu0 %v236
    %262 = vmatprep.subr.mxu0 0.0
    %263 = vmatpush1.msra.mxu0 %v237
    %264 = vmatprep.subr.mxu0 0.0
    %265 = vmatpush1.msra.mxu0 %v238
    %266 = vmatprep.subr.mxu0 0.0
    %267 = vmatpush1.msra.mxu0 %v239
    %268 = vmatprep.subr.mxu0 0.0
    %269 = vmatpush1.msra.mxu0 %v240
    %270 = vmatprep.subr.mxu0 0.0
    %271 = vmatpush1.msra.mxu0 %v241
    %272 = vmatprep.subr.mxu0 0.0
    %273 = vmatpush1.msra.mxu0 %v242
    %274 = vmatprep.subr.mxu0 0.0
    %275 = vmatpush1.msra.mxu0 %v243
    %276 = vmatprep.subr.mxu0 0.0
    %277 = vmatpush1.msra.mxu0 %v244
    %278 = vmatprep.subr.mxu0 0.0
    %279 = vmatpush1.msra.mxu0 %v245
    %280 = vmatprep.subr.mxu0 0.0
    %281 = vmatpush1.msra.mxu0 %v246
    %282 = vmatprep.subr.mxu0 0.0
    %283 = vmatpush1.msra.mxu0 %v247
    %284 = vmatprep.subr.mxu0 0.0
    %285 = vmatpush1.msra.mxu0 %v248
    %286 = vmatprep.subr.mxu0 0.0
    %287 = vmatpush1.msra.mxu0 %v249
    %288 = vmatprep.subr.mxu0 0.0
    %289 = vmatpush1.msra.mxu0 %v250
    %290 = vmatprep.subr.mxu0 0.0
    %291 = vmatpush1.msra.mxu0 0.0
    %292 = vmatprep.subr.mxu0 0.0
    %293 = vmatpush1.msra.mxu0 0.0
    %294 = vmatprep.subr.mxu0 0.0
    %295 = vmatpush1.msra.mxu0 0.0
    %296 = vmatprep.subr.mxu0 0.0
    %297 = vmatpush1.msra.mxu0 0.0
    %298 = vmatprep.subr.mxu0 0.0
    %299 = vmatpush1.msra.mxu0 0.0
    %300 = vmatprep.subr.mxu0 0.0
    %301 = vmatpush1.msra.mxu0 0.0
    %302 = vmatprep.subr.mxu0 0.0
    %303 = vmatpush1.msra.mxu0 0.0
    %304 = vmatprep.subr.mxu0 0.0
    %305 = vmatpush1.msra.mxu0 0.0
    %306 = vmatprep.subr.mxu0 0.0
    %307 = vmatpush1.msra.mxu0 0.0
    %308 = vmatprep.subr.mxu0 0.0
    %309 = vmatpush1.msra.mxu0 0.0
    %310 = vmatprep.subr.mxu0 0.0
    %311 = vmatpush1.msra.mxu0 0.0
    %312 = vmatprep.subr.mxu0 0.0
    %313 = vmatpush1.msra.mxu0 0.0
    %314 = vmatprep.subr.mxu0 0.0
    %315 = vmatpush1.msra.mxu0 0.0
    %316 = vmatprep.subr.mxu0 0.0
    %317 = vmatpush1.msra.mxu0 0.0
    %318 = vmatprep.subr.mxu0 0.0
    %319 = vmatpush1.msra.mxu0 0.0
    %320 = vmatprep.subr.mxu0 0.0
    %321 = vmatpush1.msra.mxu0 0.0
    %322 = vmatprep.mubr.f32.mxu0 0.0
    %323 = vmatmul.mubr.f32.gmra.mrb[0].mxu0 %v233
    %v324 = vpop.f32.mrb[0].mxu0
    %v325 = vadd.f32 %v256, %v324
    %v326 = vpop.f32.mrb[0].mxu0
    %327 = vmatprep.mubr.f32.mxu0 0.0
    %328 = vmatmul.mubr.f32.gmra.mrb[0].mxu0 %v234
    %v329 = vpop.f32.mrb[0].mxu0
    %v330 = vadd.f32 %v256, %v329
    %v331 = vpop.f32.mrb[0].mxu0
    %332 = vdwg.mxu0
    %vm333 = vcmask 64512
    %334 = vst.msk [vmem:[%s7] sm:$0xff] %vm333, %v325
    %335 = vst.msk [vmem:[%s7 + $0x8] sm:$0xff] %vm333, %v330
    // Predicated region
    $region34: #{tpu_custom_call.1} parent=1 // pred_check
      _
    $region35: #{tpu_custom_call.1} parent=1 // pred_check_branch
      %337 = sbr.rel (0) target = $region37
    $region36: #{tpu_custom_call.1} parent=1 // pred_region
      _
    $region37: #{tpu_custom_call.1} parent=1 // pred_fallthru
      _
    // Predicated region
    $region38: #{tpu_custom_call.1} parent=1 // pred_check
      _
    $region39: #{tpu_custom_call.1} parent=1 // pred_check_branch
      %339 = sbr.rel (0) target = $region41
    $region40: #{tpu_custom_call.1} parent=1 // pred_region
      _
    $region41: #{tpu_custom_call.1} parent=1 // pred_fallthru
      _
    %340 = vsyncpa [#allocation3], 1

</llo_original>
